<compile_context>
chip_gen: v7x
topology: tpu7x:2x2x1
jax: 0.10.0
libtpu: 0.0.40
codegen_flags: <defaults>
</compile_context>

<pallas_src>
import functools
import math

import jax
import jax.numpy as jnp
from jax.experimental import pallas as pl
from jax.experimental.pallas import tpu as pltpu


# ------------------------------- fused kernel -------------------------------

def fused_gcnii_kernel(xT_ref, w0_ref, b0_ref, aT_ref, wl_ref, w1_ref, b1_ref,
                       o_ref, *, alpha):
    """Whole GCNII network, one invocation, transposed (channels x nodes) layout.

    Shapes (sublane x lane):
      xT_ref : (F, N)   bf16   input features, transposed
      w0_ref : (H, F)   bf16   lin0 weight (PyTorch (out,in) layout -> y^T = W0 @ x^T)
      b0_ref : (H, 1)   f32    lin0 bias (column)
      aT_ref : (N, N)   bf16   ((1-alpha) * A)^T
      wl_ref : (L, H, H) bf16  per-layer ((1-beta_l)*I + beta_l*W_l)^T
      w1_ref : (C, H)   bf16   lin1 weight
      b1_ref : (C, 1)   f32    lin1 bias (column)
      o_ref  : (C, N)   f32    log_softmax output, transposed
    """
    f32 = jnp.float32
    bf16 = jnp.bfloat16

    # ---- lin0 + relu  (hidden on sublanes, nodes on lanes) ----
    x0 = jnp.maximum(
        jnp.dot(w0_ref[...], xT_ref[...], preferred_element_type=f32)
        + b0_ref[...],
        0.0)                                   # (H, N) f32
    ax0 = alpha * x0                           # residual term, folded once
    x = x0

    # ---- L x GCN2Conv, statically unrolled; all weights VMEM-resident ----
    for l in range(wl_ref.shape[0]):
        # h^T = x^T @ ((1-alpha)*A)^T + alpha * x0^T
        h = jnp.dot(x.astype(bf16), aT_ref[...],
                    preferred_element_type=f32) + ax0
        # x^T = relu(W_eff_l^T @ h^T),  W_eff_l = (1-beta_l)*I + beta_l*W_l
        x = jnp.maximum(
            jnp.dot(wl_ref[l], h.astype(bf16), preferred_element_type=f32),
            0.0)

    # ---- lin1 + log_softmax over the class (sublane) axis ----
    y = (jnp.dot(w1_ref[...], x.astype(bf16), preferred_element_type=f32)
         + b1_ref[...])                        # (C, N) f32
    m = jnp.max(y, axis=0, keepdims=True)
    z = y - m
    lse = jnp.log(jnp.sum(jnp.exp(z), axis=0, keepdims=True))
    o_ref[...] = z - lse


# ------------------------------- full forward -------------------------------

def net_forward(params, x, adj, alpha, theta):
    n, f = x.shape
    hidden = params["lin0_w"].shape[0]
    classes = params["lin1_w"].shape[0]
    assert adj.shape == (n, n)
    assert n % 128 == 0, "node count must be a multiple of 128 (lane axis)"
    assert f % 8 == 0 and hidden % 8 == 0 and classes % 8 == 0, \
        "channel dims must be multiples of 8 (sublane axis)"

    # One-time host prep: transpose to (channels, nodes), fold scalars,
    # cast MXU operands to bf16 (biases stay f32; all accumulation is f32).
    xT = x.T.astype(jnp.bfloat16)                                   # (F, N)
    w0 = params["lin0_w"].astype(jnp.bfloat16)                      # (H, F)
    b0 = params["lin0_b"].reshape(-1, 1).astype(jnp.float32)        # (H, 1)
    aT = ((1.0 - alpha) * adj).T.astype(jnp.bfloat16)               # (N, N)
    eye = jnp.eye(hidden, dtype=jnp.float32)
    w_eff_t = []
    for i, w in enumerate(params["conv_ws"], start=1):
        beta = math.log(theta / i + 1.0)
        w_eff_t.append(((1.0 - beta) * eye + beta * w).T)           # W_eff^T
    w_eff_t = jnp.stack(w_eff_t).astype(jnp.bfloat16)               # (L, H, H)
    w1 = params["lin1_w"].astype(jnp.bfloat16)                      # (C, H)
    b1 = params["lin1_b"].reshape(-1, 1).astype(jnp.float32)        # (C, 1)

    vmem = pl.BlockSpec(memory_space=pltpu.MemorySpace.VMEM)
    out_t = pl.pallas_call(
        functools.partial(fused_gcnii_kernel, alpha=float(alpha)),
        out_shape=jax.ShapeDtypeStruct((classes, n), jnp.float32),
        in_specs=[vmem] * 7,
        out_specs=vmem,
    )(xT, w0, b0, aT, w_eff_t, w1, b1)

    return out_t.T                                                  # (N, C)


# ------------------------------- pure-JAX refs --------------------------------

def reference_forward(params, x, adj, alpha, theta):
    """Full-f32, highest-precision reference (matches the PyTorch module)."""
    dot = functools.partial(jnp.dot, precision=jax.lax.Precision.HIGHEST)
    h = jnp.maximum(dot(x, params["lin0_w"].T) + params["lin0_b"], 0.0)
    x0 = h
    for i, w in enumerate(params["conv_ws"], start=1):
        beta = math.log(theta / i + 1.0)
        hh = (1.0 - alpha) * dot(adj, h) + alpha * x0
        h = jnp.maximum((1.0 - beta) * hh + beta * dot(hh, w), 0.0)
    y = dot(h, params["lin1_w"].T) + params["lin1_b"]
    return jax.nn.log_softmax(y, axis=-1)


def reference_forward_bf16(params, x, adj, alpha, theta):
    """Mirror of the kernel numerics: bf16 matmul operands, f32 accumulate."""
    bf = lambda a: a.astype(jnp.bfloat16)
    dot = lambda a, b: jnp.dot(bf(a), bf(b), preferred_element_type=jnp.float32)
    hidden = params["lin0_w"].shape[0]
    eye = jnp.eye(hidden, dtype=jnp.float32)
    a_scaled = (1.0 - alpha) * adj
    h = jnp.maximum(dot(x, params["lin0_w"].T) + params["lin0_b"], 0.0)
    x0 = h
    for i, w in enumerate(params["conv_ws"], start=1):
        beta = math.log(theta / i + 1.0)
        hh = dot(a_scaled, h) + alpha * x0
        w_eff = (1.0 - beta) * eye + beta * w
        h = jnp.maximum(dot(hh, w_eff), 0.0)
    y = dot(h, params["lin1_w"].T) + params["lin1_b"]
    return jax.nn.log_softmax(y, axis=-1)


# ------------------------------- setup helpers -------------------------------

def make_params(key, num_features, hidden, num_classes, num_layers):
    ks = jax.random.split(key, 4 + num_layers)
    return {
        "lin0_w": jax.random.normal(ks[0], (hidden, num_features), jnp.float32) * 0.1,
        "lin0_b": jax.random.normal(ks[1], (hidden,), jnp.float32) * 0.01,
        "lin1_w": jax.random.normal(ks[2], (num_classes, hidden), jnp.float32) * 0.1,
        "lin1_b": jax.random.normal(ks[3], (num_classes,), jnp.float32) * 0.01,
        "conv_ws": [
            jax.random.normal(ks[4 + i], (hidden, hidden), jnp.float32) * 0.1
            for i in range(num_layers)
        ],
    }


def make_adjacency(key, n):
    # Random symmetric graph with self loops, D^-1/2 (A+I) D^-1/2 normalized
    # (dense stand-in for the SparseTensor adj_t; propagate(adj_t, x) == A @ x).
    logits = jax.random.uniform(key, (n, n))
    a = (logits < 0.1).astype(jnp.float32)
    a = jnp.maximum(a, a.T)
    a = a + jnp.eye(n, dtype=jnp.float32)
    deg = jnp.sum(a, axis=1)
    dinv = 1.0 / jnp.sqrt(deg)
    return a * dinv[:, None] * dinv[None, :]


# ------------------------------------ main ------------------------------------

if __name__ == "__main__":
    N = 128            # number of graph nodes (multiple of 128 -> lane axis)
    NUM_FEATURES = 16
    HIDDEN = 32
    NUM_CLASSES = 8
    NUM_LAYERS = 4
    ALPHA = 0.1
    THETA = 0.5

    key = jax.random.PRNGKey(0)
    k_x, k_adj, k_par = jax.random.split(key, 3)

    x = jax.random.normal(k_x, (N, NUM_FEATURES), jnp.float32)
    adj = make_adjacency(k_adj, N)
    params = make_params(k_par, NUM_FEATURES, HIDDEN, NUM_CLASSES, NUM_LAYERS)

    out = net_forward(params, x, adj, ALPHA, THETA)
    out = jax.block_until_ready(out)

    assert out.shape == (N, NUM_CLASSES)
    assert bool(jnp.all(jnp.isfinite(out)))
    # log_softmax rows should sum (in prob space) to ~1 (computed in f32)
    assert bool(jnp.allclose(jnp.sum(jnp.exp(out), axis=-1), 1.0, atol=1e-4))

    # tight check against a reference that mirrors the kernel numerics
    ref_bf16 = reference_forward_bf16(params, x, adj, ALPHA, THETA)
    assert bool(jnp.allclose(out, ref_bf16, atol=1e-3, rtol=1e-3))

    # end-to-end check against the full-f32 module math (bf16-operand tolerance)
    ref = reference_forward(params, x, adj, ALPHA, THETA)
    assert bool(jnp.allclose(out, ref, atol=5e-2, rtol=5e-2))

    print("KERNEL_OK")
</pallas_src>

<mosaic_0001>
module attributes {stable_mosaic.version = 11 : i64} {
  func.func @fused_gcnii_kernel(%arg0: memref<16x128xbf16, #tpu.memory_space<vmem>>, %arg1: memref<32x16xbf16, #tpu.memory_space<vmem>>, %arg2: memref<32x1xf32, #tpu.memory_space<vmem>>, %arg3: memref<128x128xbf16, #tpu.memory_space<vmem>>, %arg4: memref<4x32x32xbf16, #tpu.memory_space<vmem>>, %arg5: memref<8x32xbf16, #tpu.memory_space<vmem>>, %arg6: memref<8x1xf32, #tpu.memory_space<vmem>>, %arg7: memref<8x128xf32, #tpu.memory_space<vmem>>) attributes {dimension_semantics = [], scalar_prefetch = 0 : i64, scratch_operands = 0 : i64, tpu.core_type = #tpu.core_type<tc>} {
    %c0 = arith.constant 0 : index
    %c0_0 = arith.constant 0 : index
    %0 = vector.load %arg1[%c0, %c0_0] : memref<32x16xbf16, #tpu.memory_space<vmem>>, vector<32x16xbf16>
    %c0_1 = arith.constant 0 : index
    %c0_2 = arith.constant 0 : index
    %1 = vector.load %arg0[%c0_1, %c0_2] : memref<16x128xbf16, #tpu.memory_space<vmem>>, vector<16x128xbf16>
    %cst = arith.constant dense<0.000000e+00> : vector<32x128xf32>
    %2 = tpu.matmul %0, %1, %cst {dimension_numbers = #tpu.dot_dimension_numbers<[1], [0], [0], [1], [0, 0, 1, 1], [], []>} : vector<32x16xbf16>, vector<16x128xbf16>, vector<32x128xf32> -> vector<32x128xf32>
    %c0_3 = arith.constant 0 : index
    %c0_4 = arith.constant 0 : index
    %3 = vector.load %arg2[%c0_3, %c0_4] : memref<32x1xf32, #tpu.memory_space<vmem>>, vector<32x1xf32>
    %4 = vector.broadcast %3 : vector<32x1xf32> to vector<32x128xf32>
    %5 = arith.addf %2, %4 : vector<32x128xf32>
    %cst_5 = arith.constant 0.000000e+00 : f32
    %6 = vector.broadcast %cst_5 : f32 to vector<32x128xf32>
    %7 = arith.maximumf %5, %6 : vector<32x128xf32>
    %cst_6 = arith.constant 1.000000e-01 : f32
    %8 = vector.broadcast %cst_6 : f32 to vector<32x128xf32>
    %9 = arith.mulf %8, %7 : vector<32x128xf32>
    %10 = arith.truncf %7 : vector<32x128xf32> to vector<32x128xbf16>
    %c0_7 = arith.constant 0 : index
    %c0_8 = arith.constant 0 : index
    %11 = vector.load %arg3[%c0_7, %c0_8] : memref<128x128xbf16, #tpu.memory_space<vmem>>, vector<128x128xbf16>
    %cst_9 = arith.constant dense<0.000000e+00> : vector<32x128xf32>
    %12 = tpu.matmul %10, %11, %cst_9 {dimension_numbers = #tpu.dot_dimension_numbers<[1], [0], [0], [1], [0, 0, 1, 1], [], []>} : vector<32x128xbf16>, vector<128x128xbf16>, vector<32x128xf32> -> vector<32x128xf32>
    %13 = arith.addf %12, %9 : vector<32x128xf32>
    %c0_10 = arith.constant 0 : index
    %c0_11 = arith.constant 0 : index
    %c0_12 = arith.constant 0 : index
    %14 = vector.load %arg4[%c0_10, %c0_11, %c0_12] : memref<4x32x32xbf16, #tpu.memory_space<vmem>>, vector<1x32x32xbf16>
    %15 = vector.shape_cast %14 : vector<1x32x32xbf16> to vector<32x32xbf16>
    %16 = arith.truncf %13 : vector<32x128xf32> to vector<32x128xbf16>
    %cst_13 = arith.constant dense<0.000000e+00> : vector<32x128xf32>
    %17 = tpu.matmul %15, %16, %cst_13 {dimension_numbers = #tpu.dot_dimension_numbers<[1], [0], [0], [1], [0, 0, 1, 1], [], []>} : vector<32x32xbf16>, vector<32x128xbf16>, vector<32x128xf32> -> vector<32x128xf32>
    %cst_14 = arith.constant 0.000000e+00 : f32
    %18 = vector.broadcast %cst_14 : f32 to vector<32x128xf32>
    %19 = arith.maximumf %17, %18 : vector<32x128xf32>
    %20 = arith.truncf %19 : vector<32x128xf32> to vector<32x128xbf16>
    %c0_15 = arith.constant 0 : index
    %c0_16 = arith.constant 0 : index
    %21 = vector.load %arg3[%c0_15, %c0_16] : memref<128x128xbf16, #tpu.memory_space<vmem>>, vector<128x128xbf16>
    %cst_17 = arith.constant dense<0.000000e+00> : vector<32x128xf32>
    %22 = tpu.matmul %20, %21, %cst_17 {dimension_numbers = #tpu.dot_dimension_numbers<[1], [0], [0], [1], [0, 0, 1, 1], [], []>} : vector<32x128xbf16>, vector<128x128xbf16>, vector<32x128xf32> -> vector<32x128xf32>
    %23 = arith.addf %22, %9 : vector<32x128xf32>
    %c1 = arith.constant 1 : index
    %c0_18 = arith.constant 0 : index
    %c0_19 = arith.constant 0 : index
    %24 = vector.load %arg4[%c1, %c0_18, %c0_19] : memref<4x32x32xbf16, #tpu.memory_space<vmem>>, vector<1x32x32xbf16>
    %25 = vector.shape_cast %24 : vector<1x32x32xbf16> to vector<32x32xbf16>
    %26 = arith.truncf %23 : vector<32x128xf32> to vector<32x128xbf16>
    %cst_20 = arith.constant dense<0.000000e+00> : vector<32x128xf32>
    %27 = tpu.matmul %25, %26, %cst_20 {dimension_numbers = #tpu.dot_dimension_numbers<[1], [0], [0], [1], [0, 0, 1, 1], [], []>} : vector<32x32xbf16>, vector<32x128xbf16>, vector<32x128xf32> -> vector<32x128xf32>
    %cst_21 = arith.constant 0.000000e+00 : f32
    %28 = vector.broadcast %cst_21 : f32 to vector<32x128xf32>
    %29 = arith.maximumf %27, %28 : vector<32x128xf32>
    %30 = arith.truncf %29 : vector<32x128xf32> to vector<32x128xbf16>
    %c0_22 = arith.constant 0 : index
    %c0_23 = arith.constant 0 : index
    %31 = vector.load %arg3[%c0_22, %c0_23] : memref<128x128xbf16, #tpu.memory_space<vmem>>, vector<128x128xbf16>
    %cst_24 = arith.constant dense<0.000000e+00> : vector<32x128xf32>
    %32 = tpu.matmul %30, %31, %cst_24 {dimension_numbers = #tpu.dot_dimension_numbers<[1], [0], [0], [1], [0, 0, 1, 1], [], []>} : vector<32x128xbf16>, vector<128x128xbf16>, vector<32x128xf32> -> vector<32x128xf32>
    %33 = arith.addf %32, %9 : vector<32x128xf32>
    %c2 = arith.constant 2 : index
    %c0_25 = arith.constant 0 : index
    %c0_26 = arith.constant 0 : index
    %34 = vector.load %arg4[%c2, %c0_25, %c0_26] : memref<4x32x32xbf16, #tpu.memory_space<vmem>>, vector<1x32x32xbf16>
    %35 = vector.shape_cast %34 : vector<1x32x32xbf16> to vector<32x32xbf16>
    %36 = arith.truncf %33 : vector<32x128xf32> to vector<32x128xbf16>
    %cst_27 = arith.constant dense<0.000000e+00> : vector<32x128xf32>
    %37 = tpu.matmul %35, %36, %cst_27 {dimension_numbers = #tpu.dot_dimension_numbers<[1], [0], [0], [1], [0, 0, 1, 1], [], []>} : vector<32x32xbf16>, vector<32x128xbf16>, vector<32x128xf32> -> vector<32x128xf32>
    %cst_28 = arith.constant 0.000000e+00 : f32
    %38 = vector.broadcast %cst_28 : f32 to vector<32x128xf32>
    %39 = arith.maximumf %37, %38 : vector<32x128xf32>
    %40 = arith.truncf %39 : vector<32x128xf32> to vector<32x128xbf16>
    %c0_29 = arith.constant 0 : index
    %c0_30 = arith.constant 0 : index
    %41 = vector.load %arg3[%c0_29, %c0_30] : memref<128x128xbf16, #tpu.memory_space<vmem>>, vector<128x128xbf16>
    %cst_31 = arith.constant dense<0.000000e+00> : vector<32x128xf32>
    %42 = tpu.matmul %40, %41, %cst_31 {dimension_numbers = #tpu.dot_dimension_numbers<[1], [0], [0], [1], [0, 0, 1, 1], [], []>} : vector<32x128xbf16>, vector<128x128xbf16>, vector<32x128xf32> -> vector<32x128xf32>
    %43 = arith.addf %42, %9 : vector<32x128xf32>
    %c3 = arith.constant 3 : index
    %c0_32 = arith.constant 0 : index
    %c0_33 = arith.constant 0 : index
    %44 = vector.load %arg4[%c3, %c0_32, %c0_33] : memref<4x32x32xbf16, #tpu.memory_space<vmem>>, vector<1x32x32xbf16>
    %45 = vector.shape_cast %44 : vector<1x32x32xbf16> to vector<32x32xbf16>
    %46 = arith.truncf %43 : vector<32x128xf32> to vector<32x128xbf16>
    %cst_34 = arith.constant dense<0.000000e+00> : vector<32x128xf32>
    %47 = tpu.matmul %45, %46, %cst_34 {dimension_numbers = #tpu.dot_dimension_numbers<[1], [0], [0], [1], [0, 0, 1, 1], [], []>} : vector<32x32xbf16>, vector<32x128xbf16>, vector<32x128xf32> -> vector<32x128xf32>
    %cst_35 = arith.constant 0.000000e+00 : f32
    %48 = vector.broadcast %cst_35 : f32 to vector<32x128xf32>
    %49 = arith.maximumf %47, %48 : vector<32x128xf32>
    %c0_36 = arith.constant 0 : index
    %c0_37 = arith.constant 0 : index
    %50 = vector.load %arg5[%c0_36, %c0_37] : memref<8x32xbf16, #tpu.memory_space<vmem>>, vector<8x32xbf16>
    %51 = arith.truncf %49 : vector<32x128xf32> to vector<32x128xbf16>
    %cst_38 = arith.constant dense<0.000000e+00> : vector<8x128xf32>
    %52 = tpu.matmul %50, %51, %cst_38 {dimension_numbers = #tpu.dot_dimension_numbers<[1], [0], [0], [1], [0, 0, 1, 1], [], []>} : vector<8x32xbf16>, vector<32x128xbf16>, vector<8x128xf32> -> vector<8x128xf32>
    %c0_39 = arith.constant 0 : index
    %c0_40 = arith.constant 0 : index
    %53 = vector.load %arg6[%c0_39, %c0_40] : memref<8x1xf32, #tpu.memory_space<vmem>>, vector<8x1xf32>
    %54 = vector.broadcast %53 : vector<8x1xf32> to vector<8x128xf32>
    %55 = arith.addf %52, %54 : vector<8x128xf32>
    %cst_41 = arith.constant dense<0xFF800000> : vector<128xf32>
    %56 = vector.multi_reduction <maximumf>, %55, %cst_41 [0] : vector<8x128xf32> to vector<128xf32>
    %57 = vector.shape_cast %56 : vector<128xf32> to vector<1x128xf32>
    %58 = vector.broadcast %57 : vector<1x128xf32> to vector<8x128xf32>
    %59 = arith.subf %55, %58 : vector<8x128xf32>
    %60 = math.exp %59 : vector<8x128xf32>
    %cst_42 = arith.constant dense<0.000000e+00> : vector<128xf32>
    %61 = vector.multi_reduction <add>, %60, %cst_42 [0] : vector<8x128xf32> to vector<128xf32>
    %62 = vector.shape_cast %61 : vector<128xf32> to vector<1x128xf32>
    %63 = math.log %62 : vector<1x128xf32>
    %64 = vector.broadcast %63 : vector<1x128xf32> to vector<8x128xf32>
    %65 = arith.subf %59, %64 : vector<8x128xf32>
    %c0_43 = arith.constant 0 : index
    %c0_44 = arith.constant 0 : index
    %66 = vector.load %arg7[%c0_43, %c0_44] : memref<8x128xf32, #tpu.memory_space<vmem>>, vector<8x128xf32>
    tpu.vector_store %arg7[%c0_43, %c0_44], %65 {strides = array<i32>} : memref<8x128xf32, #tpu.memory_space<vmem>>, vector<8x128xf32>,
    return
  }
}

</mosaic_0001>

<llo_original>
// kernel: tpu_custom_call.1
$region0: #{tpu_custom_call.1}
  #allocation0 [shape = 'u32[]', space=smem, size = 0x4, offset = 0x4, fixed_abs, tag = 'smem constant byte address 0x4 - core index']
  #allocation1 [shape = 'u32[144,128]{1,0:T(1,128)}', space=vmem, size = 0x12000, scoped, tag = 'internal scratch']
  %s0 = inlined_call_operand.vmem [shape: bf16[16,128], index: 0, kind: input, shape index: {}]
  %s1 = inlined_call_operand.vmem [shape: bf16[32,16], index: 1, kind: input, shape index: {}]
  %s2 = inlined_call_operand.vmem [shape: f32[32,1], index: 2, kind: input, shape index: {}]
  %s3 = inlined_call_operand.vmem [shape: bf16[128,128], index: 3, kind: input, shape index: {}]
  %s4 = inlined_call_operand.hbm [shape: bf16[4,32,32], index: 4, kind: input, shape index: {}]
  %s5 = inlined_call_operand.vmem [shape: bf16[8,32], index: 5, kind: input, shape index: {}]
  %s6 = inlined_call_operand.vmem [shape: f32[8,1], index: 6, kind: input, shape index: {}]
  %s7 = inlined_call_operand.hbm [shape: f32[8,128], index: 7, kind: output, shape index: {}]
  %s8 = sld [smem:[#allocation0]]
  $region42: #{tpu_custom_call.1} parent=0
    _
  %s10 = ssub.s32 1, %s8
  %s11 = scalar_select 0, %s10, %s8
  $region1: #{tpu_custom_call.1} parent=0
    #allocation2 [shape = 'u8[32768]{0}', space=vmem, size = 0x8000, scoped, tag = 'input window, operand 4, single buffered']
    #allocation3 [shape = 's32[1]{0}', space=sflag, size = 0x4, scoped, tag = 'scoped memory for tpu_custom_call.1']
    #allocation4 [shape = 's32[1]{0}', space=sflag, size = 0x4, scoped, tag = 'scoped memory for tpu_custom_call.1']
    #allocation5 [shape = 'u8[4096]{0}', space=vmem, size = 0x1000, scoped, tag = 'output window, operand 0, single buffered']
    %12 = vsyncpa [#allocation3], 0
    %13 = vsyncpa [#allocation4], 0
    // Predicated region
    $region2: #{tpu_custom_call.1} parent=1 // pred_check
      _
    $region3: #{tpu_custom_call.1} parent=1 // pred_check_branch
      %15 = sbr.rel (0) target = $region5
    $region4: #{tpu_custom_call.1} parent=1 // pred_region
      _
    $region5: #{tpu_custom_call.1} parent=1 // pred_fallthru
      _
    // Predicated region
    $region6: #{tpu_custom_call.1} parent=1 // pred_check
      _
    $region7: #{tpu_custom_call.1} parent=1 // pred_check_branch
      %17 = sbr.rel (0) target = $region9
    $region8: #{tpu_custom_call.1} parent=1 // pred_region
      _
    $region9: #{tpu_custom_call.1} parent=1 // pred_fallthru
      _
    // Predicated region
    $region10: #{tpu_custom_call.1} parent=1 // pred_check
      _
    $region11: #{tpu_custom_call.1} parent=1 // pred_check_branch
      %19 = sbr.rel (0) target = $region13
    $region12: #{tpu_custom_call.1} parent=1 // pred_region
      _
    $region13: #{tpu_custom_call.1} parent=1 // pred_fallthru
      _
    // Predicated region
    $region14: #{tpu_custom_call.1} parent=1 // pred_check
      _
    $region15: #{tpu_custom_call.1} parent=1 // pred_check_branch
      %21 = sbr.rel (0) target = $region17
    $region16: #{tpu_custom_call.1} parent=1 // pred_region
      _
    $region17: #{tpu_custom_call.1} parent=1 // pred_fallthru
      _
    // Predicated region
    $region18: #{tpu_custom_call.1} parent=1 // pred_check
      _
    $region19: #{tpu_custom_call.1} parent=1 // pred_check_branch
      %23 = sbr.rel (0) target = $region21
    $region20: #{tpu_custom_call.1} parent=1 // pred_region
      %s25 = ssub.s32 1024, 1024
      %26 = vsyncadd [#allocation3], %s25
      %s27 = sshll.u32 [#allocation2], 4
      %s28 = int_to_ptr.vmem [resolvable:$true] %s27
      %33 = dma.hbm_to_vmem [thread:$0]  %s4, 1024, %s28, [#allocation3], 64, 64, 4
    $region21: #{tpu_custom_call.1} parent=1 // pred_fallthru
      _
    // Predicated region
    $region22: #{tpu_custom_call.1} parent=1 // pred_check
      _
    $region23: #{tpu_custom_call.1} parent=1 // pred_check_branch
      %35 = sbr.rel (0) target = $region25
    $region24: #{tpu_custom_call.1} parent=1 // pred_region
      _
    $region25: #{tpu_custom_call.1} parent=1 // pred_fallthru
      _
    // Predicated region
    $region26: #{tpu_custom_call.1} parent=1 // pred_check
      _
    $region27: #{tpu_custom_call.1} parent=1 // pred_check_branch
      %37 = sbr.rel (0) target = $region29
    $region28: #{tpu_custom_call.1} parent=1 // pred_region
      _
    $region29: #{tpu_custom_call.1} parent=1 // pred_fallthru
      _
    // Predicated region
    $region30: #{tpu_custom_call.1} parent=1 // pred_check
      _
    $region31: #{tpu_custom_call.1} parent=1 // pred_check_branch
      %39 = sbr.rel (0) target = $region33
    $region32: #{tpu_custom_call.1} parent=1 // pred_region
      %40 = dma.done [#allocation3], 1024
    $region33: #{tpu_custom_call.1} parent=1 // pred_fallthru
      _
    %v42 = vld [vmem:[%s1] sm:$0xf]
    %v43 = vld [vmem:[%s1 + $0x4] sm:$0xf]
    %v44 = vld [vmem:[%s1 + $0x8] sm:$0xf]
    %v45 = vld [vmem:[%s1 + $0xc] sm:$0xf]
    %v46 = vld [vmem:[%s0] sm:$0xf]
    %v47 = vld [vmem:[%s0 + $0x4] sm:$0xf]
    %v48 = vld [vmem:[%s2] sm:$0xff]
    %v49 = vld [vmem:[%s2 + $0x8] sm:$0xff]
    %v50 = vld [vmem:[%s2 + $0x10] sm:$0xff]
    %v51 = vld [vmem:[%s2 + $0x18] sm:$0xff]
    %53 = vset.pattern.permute.xlu0 0
    %54 = vperm.xlu0 %53, %v48
    %v55 = vpop.permute.xlu0 %54
    %58 = vset.pattern.permute.xlu0 0
    %59 = vperm.xlu0 %58, %v49
    %v60 = vpop.permute.xlu0 %59
    %63 = vset.pattern.permute.xlu0 0
    %64 = vperm.xlu0 %63, %v50
    %v65 = vpop.permute.xlu0 %64
    %68 = vset.pattern.permute.xlu0 0
    %69 = vperm.xlu0 %68, %v51
    %v70 = vpop.permute.xlu0 %69
    %v76 = vunpack.c.l.b16 %v42
    %v77 = vunpack.c.l.b16 %v43
    %v78 = vunpack.c.l.b16 %v44
    %v79 = vunpack.c.l.b16 %v45
    %v80 = vpack.c.b16 %v77, %v76
    %v81 = vpack.c.b16 %v79, %v78
    %v84 = vunpack.c.l.b16 %v46
    %v85 = vunpack.c.l.b16 %v47
    %v86 = vpack.c.b16 %v85, %v84
    %vm88 = vcmask 130048
    %v90 = vsel %vm88, %v80, 0
    %v93 = vsel %vm88, %v81, 0
    %95 = vmatprep.subr.bf16.mxu0 0
    %96 = vmatpush1.bf16.msra.mxu0 %v86
    %97 = vmatprep.subr.bf16.mxu0 0
    %98 = vmatpush1.bf16.msra.mxu0 0
    %99 = vmatprep.subr.bf16.mxu0 0
    %100 = vmatpush1.bf16.msra.mxu0 0
    %101 = vmatprep.subr.bf16.mxu0 0
    %102 = vmatpush1.bf16.msra.mxu0 0
    %103 = vmatprep.subr.bf16.mxu0 0
    %104 = vmatpush1.bf16.msra.mxu0 0
    %105 = vmatprep.subr.bf16.mxu0 0
    %106 = vmatpush1.bf16.msra.mxu0 0
    %107 = vmatprep.subr.bf16.mxu0 0
    %108 = vmatpush1.bf16.msra.mxu0 0
    %109 = vmatprep.subr.bf16.mxu0 0
    %110 = vmatpush1.bf16.msra.mxu0 0
    %111 = vmatprep.subr.bf16.mxu0 0
    %112 = vmatpush1.bf16.msra.mxu0 0
    %113 = vmatprep.subr.bf16.mxu0 0
    %114 = vmatpush1.bf16.msra.mxu0 0
    %115 = vmatprep.subr.bf16.mxu0 0
    %116 = vmatpush1.bf16.msra.mxu0 0
    %117 = vmatprep.subr.bf16.mxu0 0
    %118 = vmatpush1.bf16.msra.mxu0 0
    %119 = vmatprep.subr.bf16.mxu0 0
    %120 = vmatpush1.bf16.msra.mxu0 0
    %121 = vmatprep.subr.bf16.mxu0 0
    %122 = vmatpush1.bf16.msra.mxu0 0
    %123 = vmatprep.subr.bf16.mxu0 0
    %124 = vmatpush1.bf16.msra.mxu0 0
    %125 = vmatprep.subr.bf16.mxu0 0
    %126 = vmatpush1.bf16.msra.mxu0 0
    %127 = vmatprep.mubr.bf16.mxu0 0
    %128 = vmatmul.mubr.bf16.gmra.mrb[0].mxu0 %v90
    %v129 = vpop.f32.mrb[0].mxu0
    %v130 = vadd.f32 %v55, %v129
    %v131 = vpop.f32.mrb[0].mxu0
    %v132 = vpop.f32.mrb[0].mxu0
    %v133 = vadd.f32 %v60, %v132
    %v134 = vpop.f32.mrb[0].mxu0
    %135 = vmatprep.mubr.bf16.mxu0 0
    %136 = vmatmul.mubr.bf16.gmra.mrb[0].mxu0 %v93
    %v137 = vpop.f32.mrb[0].mxu0
    %v138 = vadd.f32 %v65, %v137
    %v139 = vpop.f32.mrb[0].mxu0
    %v140 = vpop.f32.mrb[0].mxu0
    %v141 = vadd.f32 %v70, %v140
    %v142 = vpop.f32.mrb[0].mxu0
    %143 = vdwg.mxu0
    %v144 = vmax.f32 %v130, 0.0
    %v145 = vmax.f32 %v133, 0.0
    %v146 = vmax.f32 %v138, 0.0
    %v147 = vmax.f32 %v141, 0.0
    %v148 = vmul.f32 %v144, 0.1
    %v149 = vmul.f32 %v145, 0.1
    %v150 = vmul.f32 %v146, 0.1
    %v151 = vmul.f32 %v147, 0.1
    %v152 = vpack.c.bf16 %v145, %v144
    %v153 = vpack.c.bf16 %v147, %v146
    %v154 = vld [vmem:[%s3] sm:$0xf]
    %v155 = vld [vmem:[%s3 + $0x4] sm:$0xf]
    %v156 = vld [vmem:[%s3 + $0x8] sm:$0xf]
    %v157 = vld [vmem:[%s3 + $0xc] sm:$0xf]
    %v158 = vld [vmem:[%s3 + $0x10] sm:$0xf]
    %v159 = vld [vmem:[%s3 + $0x14] sm:$0xf]
    %v160 = vld [vmem:[%s3 + $0x18] sm:$0xf]
    %v161 = vld [vmem:[%s3 + $0x1c] sm:$0xf]
    %v162 = vld [vmem:[%s3 + $0x20] sm:$0xf]
    %v163 = vld [vmem:[%s3 + $0x24] sm:$0xf]
    %v164 = vld [vmem:[%s3 + $0x28] sm:$0xf]
    %v165 = vld [vmem:[%s3 + $0x2c] sm:$0xf]
    %v166 = vld [vmem:[%s3 + $0x30] sm:$0xf]
    %v167 = vld [vmem:[%s3 + $0x34] sm:$0xf]
    %v168 = vld [vmem:[%s3 + $0x38] sm:$0xf]
    %v169 = vld [vmem:[%s3 + $0x3c] sm:$0xf]
    %v186 = vunpack.c.l.b16 %v154
    %v187 = vunpack.c.l.b16 %v155
    %v188 = vunpack.c.l.b16 %v156
    %v189 = vunpack.c.l.b16 %v157
    %v190 = vunpack.c.l.b16 %v158
    %v191 = vunpack.c.l.b16 %v159
    %v192 = vunpack.c.l.b16 %v160
    %v193 = vunpack.c.l.b16 %v161
    %v194 = vunpack.c.l.b16 %v162
    %v195 = vunpack.c.l.b16 %v163
    %v196 = vunpack.c.l.b16 %v164
    %v197 = vunpack.c.l.b16 %v165
    %v198 = vunpack.c.l.b16 %v166
    %v199 = vunpack.c.l.b16 %v167
    %v200 = vunpack.c.l.b16 %v168
    %v201 = vunpack.c.l.b16 %v169
    %v202 = vpack.c.b16 %v187, %v186
    %v203 = vpack.c.b16 %v189, %v188
    %v204 = vpack.c.b16 %v191, %v190
    %v205 = vpack.c.b16 %v193, %v192
    %v206 = vpack.c.b16 %v195, %v194
    %v207 = vpack.c.b16 %v197, %v196
    %v208 = vpack.c.b16 %v199, %v198
    %v209 = vpack.c.b16 %v201, %v200
    %218 = vmatprep.subr.bf16.mxu0 0
    %219 = vmatpush1.bf16.msra.mxu0 %v202
    %220 = vmatprep.subr.bf16.mxu0 0
    %221 = vmatpush1.bf16.msra.mxu0 %v203
    %222 = vmatprep.subr.bf16.mxu0 0
    %223 = vmatpush1.bf16.msra.mxu0 %v204
    %224 = vmatprep.subr.bf16.mxu0 0
    %225 = vmatpush1.bf16.msra.mxu0 %v205
    %226 = vmatprep.subr.bf16.mxu0 0
    %227 = vmatpush1.bf16.msra.mxu0 %v206
    %228 = vmatprep.subr.bf16.mxu0 0
    %229 = vmatpush1.bf16.msra.mxu0 %v207
    %230 = vmatprep.subr.bf16.mxu0 0
    %231 = vmatpush1.bf16.msra.mxu0 %v208
    %232 = vmatprep.subr.bf16.mxu0 0
    %233 = vmatpush1.bf16.msra.mxu0 %v209
    %234 = vmatprep.subr.bf16.mxu0 0
    %235 = vmatpush1.bf16.msra.mxu0 0
    %236 = vmatprep.subr.bf16.mxu0 0
    %237 = vmatpush1.bf16.msra.mxu0 0
    %238 = vmatprep.subr.bf16.mxu0 0
    %239 = vmatpush1.bf16.msra.mxu0 0
    %240 = vmatprep.subr.bf16.mxu0 0
    %241 = vmatpush1.bf16.msra.mxu0 0
    %242 = vmatprep.subr.bf16.mxu0 0
    %243 = vmatpush1.bf16.msra.mxu0 0
    %244 = vmatprep.subr.bf16.mxu0 0
    %245 = vmatpush1.bf16.msra.mxu0 0
    %246 = vmatprep.subr.bf16.mxu0 0
    %247 = vmatpush1.bf16.msra.mxu0 0
    %248 = vmatprep.subr.bf16.mxu0 0
    %249 = vmatpush1.bf16.msra.mxu0 0
    %250 = vmatprep.mubr.bf16.mxu0 0
    %251 = vmatmul.mubr.bf16.gmra.mrb[0].mxu0 %v152
    %v252 = vpop.f32.mrb[0].mxu0
    %v253 = vadd.f32 %v148, %v252
    %v254 = vpop.f32.mrb[0].mxu0
    %v255 = vpop.f32.mrb[0].mxu0
    %v256 = vadd.f32 %v149, %v255
    %v257 = vpop.f32.mrb[0].mxu0
    %258 = vmatprep.mubr.bf16.mxu0 0
    %259 = vmatmul.mubr.bf16.gmra.mrb[0].mxu0 %v153
    %v260 = vpop.f32.mrb[0].mxu0
    %v261 = vadd.f32 %v150, %v260
    %v262 = vpop.f32.mrb[0].mxu0
    %v263 = vpop.f32.mrb[0].mxu0
    %v264 = vadd.f32 %v151, %v263
    %v265 = vpop.f32.mrb[0].mxu0
    %266 = vdwg.mxu0
    %v267 = vld [vmem:[#allocation2] sm:$0xf]
    %v268 = vld [vmem:[#allocation2 + $0x4] sm:$0xf]
    %v269 = vld [vmem:[#allocation2 + $0x8] sm:$0xf]
    %v270 = vld [vmem:[#allocation2 + $0xc] sm:$0xf]
    %v271 = vpack.c.bf16 %v256, %v253
    %v272 = vpack.c.bf16 %v264, %v261
    %v277 = vunpack.c.l.b16 %v267
    %v278 = vunpack.c.l.b16 %v268
    %v279 = vunpack.c.l.b16 %v269
    %v280 = vunpack.c.l.b16 %v270
    %v281 = vpack.c.b16 %v278, %v277
    %v282 = vpack.c.b16 %v280, %v279
    %vm283 = vcmask 261120
    %v285 = vsel %vm283, %v281, 0
    %v288 = vsel %vm283, %v282, 0
    %290 = vmatprep.subr.bf16.mxu0 0
    %291 = vmatpush1.bf16.msra.mxu0 %v271
    %292 = vmatprep.subr.bf16.mxu0 0
    %293 = vmatpush1.bf16.msra.mxu0 %v272
    %294 = vmatprep.subr.bf16.mxu0 0
    %295 = vmatpush1.bf16.msra.mxu0 0
    %296 = vmatprep.subr.bf16.mxu0 0
    %297 = vmatpush1.bf16.msra.mxu0 0
    %298 = vmatprep.subr.bf16.mxu0 0
    %299 = vmatpush1.bf16.msra.mxu0 0
    %300 = vmatprep.subr.bf16.mxu0 0
    %301 = vmatpush1.bf16.msra.mxu0 0
    %302 = vmatprep.subr.bf16.mxu0 0
    %303 = vmatpush1.bf16.msra.mxu0 0
    %304 = vmatprep.subr.bf16.mxu0 0
    %305 = vmatpush1.bf16.msra.mxu0 0
    %306 = vmatprep.subr.bf16.mxu0 0
    %307 = vmatpush1.bf16.msra.mxu0 0
    %308 = vmatprep.subr.bf16.mxu0 0
    %309 = vmatpush1.bf16.msra.mxu0 0
    %310 = vmatprep.subr.bf16.mxu0 0
    %311 = vmatpush1.bf16.msra.mxu0 0
    %312 = vmatprep.subr.bf16.mxu0 0
    %313 = vmatpush1.bf16.msra.mxu0 0
    %314 = vmatprep.subr.bf16.mxu0 0
    %315 = vmatpush1.bf16.msra.mxu0 0
    %316 = vmatprep.subr.bf16.mxu0 0
    %317 = vmatpush1.bf16.msra.mxu0 0
    %318 = vmatprep.subr.bf16.mxu0 0
    %319 = vmatpush1.bf16.msra.mxu0 0
    %320 = vmatprep.subr.bf16.mxu0 0
    %321 = vmatpush1.bf16.msra.mxu0 0
    %322 = vmatprep.mubr.bf16.mxu0 0
    %323 = vmatmul.mubr.bf16.gmra.mrb[0].mxu0 %v285
    %v324 = vpop.f32.mrb[0].mxu0
    %v325 = vadd.f32 0.0, %v324
    %v326 = vpop.f32.mrb[0].mxu0
    %v327 = vpop.f32.mrb[0].mxu0
    %v328 = vadd.f32 0.0, %v327
    %v329 = vpop.f32.mrb[0].mxu0
    %330 = vmatprep.mubr.bf16.mxu0 0
    %331 = vmatmul.mubr.bf16.gmra.mrb[0].mxu0 %v288
    %v332 = vpop.f32.mrb[0].mxu0
    %v333 = vadd.f32 0.0, %v332
    %v334 = vpop.f32.mrb[0].mxu0
    %v335 = vpop.f32.mrb[0].mxu0
    %v336 = vadd.f32 0.0, %v335
    %v337 = vpop.f32.mrb[0].mxu0
    %338 = vdwg.mxu0
    %v339 = vmax.f32 %v325, 0.0
    %v340 = vmax.f32 %v328, 0.0
    %v341 = vmax.f32 %v333, 0.0
    %v342 = vmax.f32 %v336, 0.0
    %v343 = vpack.c.bf16 %v340, %v339
    %v344 = vpack.c.bf16 %v342, %v341
    %345 = vmatprep.subr.bf16.mxu0 0
    %346 = vmatpush1.bf16.msra.mxu0 %v202
    %347 = vmatprep.subr.bf16.mxu0 0
    %348 = vmatpush1.bf16.msra.mxu0 %v203
    %349 = vmatprep.subr.bf16.mxu0 0
    %350 = vmatpush1.bf16.msra.mxu0 %v204
    %351 = vmatprep.subr.bf16.mxu0 0
    %352 = vmatpush1.bf16.msra.mxu0 %v205
    %353 = vmatprep.subr.bf16.mxu0 0
    %354 = vmatpush1.bf16.msra.mxu0 %v206
    %355 = vmatprep.subr.bf16.mxu0 0
    %356 = vmatpush1.bf16.msra.mxu0 %v207
    %357 = vmatprep.subr.bf16.mxu0 0
    %358 = vmatpush1.bf16.msra.mxu0 %v208
    %359 = vmatprep.subr.bf16.mxu0 0
    %360 = vmatpush1.bf16.msra.mxu0 %v209
    %361 = vmatprep.subr.bf16.mxu0 0
    %362 = vmatpush1.bf16.msra.mxu0 0
    %363 = vmatprep.subr.bf16.mxu0 0
    %364 = vmatpush1.bf16.msra.mxu0 0
    %365 = vmatprep.subr.bf16.mxu0 0
    %366 = vmatpush1.bf16.msra.mxu0 0
    %367 = vmatprep.subr.bf16.mxu0 0
    %368 = vmatpush1.bf16.msra.mxu0 0
    %369 = vmatprep.subr.bf16.mxu0 0
    %370 = vmatpush1.bf16.msra.mxu0 0
    %371 = vmatprep.subr.bf16.mxu0 0
    %372 = vmatpush1.bf16.msra.mxu0 0
    %373 = vmatprep.subr.bf16.mxu0 0
    %374 = vmatpush1.bf16.msra.mxu0 0
    %375 = vmatprep.subr.bf16.mxu0 0
    %376 = vmatpush1.bf16.msra.mxu0 0
    %377 = vmatprep.mubr.bf16.mxu0 0
    %378 = vmatmul.mubr.bf16.gmra.mrb[0].mxu0 %v343
    %v379 = vpop.f32.mrb[0].mxu0
    %v380 = vadd.f32 %v148, %v379
    %v381 = vpop.f32.mrb[0].mxu0
    %v382 = vpop.f32.mrb[0].mxu0
    %v383 = vadd.f32 %v149, %v382
    %v384 = vpop.f32.mrb[0].mxu0
    %385 = vmatprep.mubr.bf16.mxu0 0
    %386 = vmatmul.mubr.bf16.gmra.mrb[0].mxu0 %v344
    %v387 = vpop.f32.mrb[0].mxu0
    %v388 = vadd.f32 %v150, %v387
    %v389 = vpop.f32.mrb[0].mxu0
    %v390 = vpop.f32.mrb[0].mxu0
    %v391 = vadd.f32 %v151, %v390
    %v392 = vpop.f32.mrb[0].mxu0
    %393 = vdwg.mxu0
    %s394 = scalar_lea.vmem [#allocation2], 16
    %v395 = vld [vmem:[%s394] sm:$0xf]
    %v396 = vld [vmem:[%s394 + $0x4] sm:$0xf]
    %v397 = vld [vmem:[%s394 + $0x8] sm:$0xf]
    %v398 = vld [vmem:[%s394 + $0xc] sm:$0xf]
    %v399 = vpack.c.bf16 %v383, %v380
    %v400 = vpack.c.bf16 %v391, %v388
    %v405 = vunpack.c.l.b16 %v395
    %v406 = vunpack.c.l.b16 %v396
    %v407 = vunpack.c.l.b16 %v397
    %v408 = vunpack.c.l.b16 %v398
    %v409 = vpack.c.b16 %v406, %v405
    %v410 = vpack.c.b16 %v408, %v407
    %v412 = vsel %vm283, %v409, 0
    %v415 = vsel %vm283, %v410, 0
    %417 = vmatprep.subr.bf16.mxu0 0
    %418 = vmatpush1.bf16.msra.mxu0 %v399
    %419 = vmatprep.subr.bf16.mxu0 0
    %420 = vmatpush1.bf16.msra.mxu0 %v400
    %421 = vmatprep.subr.bf16.mxu0 0
    %422 = vmatpush1.bf16.msra.mxu0 0
    %423 = vmatprep.subr.bf16.mxu0 0
    %424 = vmatpush1.bf16.msra.mxu0 0
    %425 = vmatprep.subr.bf16.mxu0 0
    %426 = vmatpush1.bf16.msra.mxu0 0
    %427 = vmatprep.subr.bf16.mxu0 0
    %428 = vmatpush1.bf16.msra.mxu0 0
    %429 = vmatprep.subr.bf16.mxu0 0
    %430 = vmatpush1.bf16.msra.mxu0 0
    %431 = vmatprep.subr.bf16.mxu0 0
    %432 = vmatpush1.bf16.msra.mxu0 0
    %433 = vmatprep.subr.bf16.mxu0 0
    %434 = vmatpush1.bf16.msra.mxu0 0
    %435 = vmatprep.subr.bf16.mxu0 0
    %436 = vmatpush1.bf16.msra.mxu0 0
    %437 = vmatprep.subr.bf16.mxu0 0
    %438 = vmatpush1.bf16.msra.mxu0 0
    %439 = vmatprep.subr.bf16.mxu0 0
    %440 = vmatpush1.bf16.msra.mxu0 0
    %441 = vmatprep.subr.bf16.mxu0 0
    %442 = vmatpush1.bf16.msra.mxu0 0
    %443 = vmatprep.subr.bf16.mxu0 0
    %444 = vmatpush1.bf16.msra.mxu0 0
    %445 = vmatprep.subr.bf16.mxu0 0
    %446 = vmatpush1.bf16.msra.mxu0 0
    %447 = vmatprep.subr.bf16.mxu0 0
    %448 = vmatpush1.bf16.msra.mxu0 0
    %449 = vmatprep.mubr.bf16.mxu0 0
    %450 = vmatmul.mubr.bf16.gmra.mrb[0].mxu0 %v412
    %v451 = vpop.f32.mrb[0].mxu0
    %v452 = vadd.f32 0.0, %v451
    %v453 = vpop.f32.mrb[0].mxu0
    %v454 = vpop.f32.mrb[0].mxu0
    %v455 = vadd.f32 0.0, %v454
    %v456 = vpop.f32.mrb[0].mxu0
    %457 = vmatprep.mubr.bf16.mxu0 0
    %458 = vmatmul.mubr.bf16.gmra.mrb[0].mxu0 %v415
    %v459 = vpop.f32.mrb[0].mxu0
    %v460 = vadd.f32 0.0, %v459
    %v461 = vpop.f32.mrb[0].mxu0
    %v462 = vpop.f32.mrb[0].mxu0
    %v463 = vadd.f32 0.0, %v462
    %v464 = vpop.f32.mrb[0].mxu0
    %465 = vdwg.mxu0
    %v466 = vmax.f32 %v452, 0.0
    %v467 = vmax.f32 %v455, 0.0
    %v468 = vmax.f32 %v460, 0.0
    %v469 = vmax.f32 %v463, 0.0
    %v470 = vpack.c.bf16 %v467, %v466
    %v471 = vpack.c.bf16 %v469, %v468
    %472 = vmatprep.subr.bf16.mxu0 0
    %473 = vmatpush1.bf16.msra.mxu0 %v202
    %474 = vmatprep.subr.bf16.mxu0 0
    %475 = vmatpush1.bf16.msra.mxu0 %v203
    %476 = vmatprep.subr.bf16.mxu0 0
    %477 = vmatpush1.bf16.msra.mxu0 %v204
    %478 = vmatprep.subr.bf16.mxu0 0
    %479 = vmatpush1.bf16.msra.mxu0 %v205
    %480 = vmatprep.subr.bf16.mxu0 0
    %481 = vmatpush1.bf16.msra.mxu0 %v206
    %482 = vmatprep.subr.bf16.mxu0 0
    %483 = vmatpush1.bf16.msra.mxu0 %v207
    %484 = vmatprep.subr.bf16.mxu0 0
    %485 = vmatpush1.bf16.msra.mxu0 %v208
    %486 = vmatprep.subr.bf16.mxu0 0
    %487 = vmatpush1.bf16.msra.mxu0 %v209
    %488 = vmatprep.subr.bf16.mxu0 0
    %489 = vmatpush1.bf16.msra.mxu0 0
    %490 = vmatprep.subr.bf16.mxu0 0
    %491 = vmatpush1.bf16.msra.mxu0 0
    %492 = vmatprep.subr.bf16.mxu0 0
    %493 = vmatpush1.bf16.msra.mxu0 0
    %494 = vmatprep.subr.bf16.mxu0 0
    %495 = vmatpush1.bf16.msra.mxu0 0
    %496 = vmatprep.subr.bf16.mxu0 0
    %497 = vmatpush1.bf16.msra.mxu0 0
    %498 = vmatprep.subr.bf16.mxu0 0
    %499 = vmatpush1.bf16.msra.mxu0 0
    %500 = vmatprep.subr.bf16.mxu0 0
    %501 = vmatpush1.bf16.msra.mxu0 0
    %502 = vmatprep.subr.bf16.mxu0 0
    %503 = vmatpush1.bf16.msra.mxu0 0
    %504 = vmatprep.mubr.bf16.mxu0 0
    %505 = vmatmul.mubr.bf16.gmra.mrb[0].mxu0 %v470
    %v506 = vpop.f32.mrb[0].mxu0
    %v507 = vadd.f32 %v148, %v506
    %v508 = vpop.f32.mrb[0].mxu0
    %v509 = vpop.f32.mrb[0].mxu0
    %v510 = vadd.f32 %v149, %v509
    %v511 = vpop.f32.mrb[0].mxu0
    %512 = vmatprep.mubr.bf16.mxu0 0
    %513 = vmatmul.mubr.bf16.gmra.mrb[0].mxu0 %v471
    %v514 = vpop.f32.mrb[0].mxu0
    %v515 = vadd.f32 %v150, %v514
    %v516 = vpop.f32.mrb[0].mxu0
    %v517 = vpop.f32.mrb[0].mxu0
    %v518 = vadd.f32 %v151, %v517
    %v519 = vpop.f32.mrb[0].mxu0
    %520 = vdwg.mxu0
    %s521 = scalar_lea.vmem [#allocation2], 32
    %v522 = vld [vmem:[%s521] sm:$0xf]
    %v523 = vld [vmem:[%s521 + $0x4] sm:$0xf]
    %v524 = vld [vmem:[%s521 + $0x8] sm:$0xf]
    %v525 = vld [vmem:[%s521 + $0xc] sm:$0xf]
    %v526 = vpack.c.bf16 %v510, %v507
    %v527 = vpack.c.bf16 %v518, %v515
    %v532 = vunpack.c.l.b16 %v522
    %v533 = vunpack.c.l.b16 %v523
    %v534 = vunpack.c.l.b16 %v524
    %v535 = vunpack.c.l.b16 %v525
    %v536 = vpack.c.b16 %v533, %v532
    %v537 = vpack.c.b16 %v535, %v534
    %v539 = vsel %vm283, %v536, 0
    %v542 = vsel %vm283, %v537, 0
    %544 = vmatprep.subr.bf16.mxu0 0
    %545 = vmatpush1.bf16.msra.mxu0 %v526
    %546 = vmatprep.subr.bf16.mxu0 0
    %547 = vmatpush1.bf16.msra.mxu0 %v527
    %548 = vmatprep.subr.bf16.mxu0 0
    %549 = vmatpush1.bf16.msra.mxu0 0
    %550 = vmatprep.subr.bf16.mxu0 0
    %551 = vmatpush1.bf16.msra.mxu0 0
    %552 = vmatprep.subr.bf16.mxu0 0
    %553 = vmatpush1.bf16.msra.mxu0 0
    %554 = vmatprep.subr.bf16.mxu0 0
    %555 = vmatpush1.bf16.msra.mxu0 0
    %556 = vmatprep.subr.bf16.mxu0 0
    %557 = vmatpush1.bf16.msra.mxu0 0
    %558 = vmatprep.subr.bf16.mxu0 0
    %559 = vmatpush1.bf16.msra.mxu0 0
    %560 = vmatprep.subr.bf16.mxu0 0
    %561 = vmatpush1.bf16.msra.mxu0 0
    %562 = vmatprep.subr.bf16.mxu0 0
    %563 = vmatpush1.bf16.msra.mxu0 0
    %564 = vmatprep.subr.bf16.mxu0 0
    %565 = vmatpush1.bf16.msra.mxu0 0
    %566 = vmatprep.subr.bf16.mxu0 0
    %567 = vmatpush1.bf16.msra.mxu0 0
    %568 = vmatprep.subr.bf16.mxu0 0
    %569 = vmatpush1.bf16.msra.mxu0 0
    %570 = vmatprep.subr.bf16.mxu0 0
    %571 = vmatpush1.bf16.msra.mxu0 0
    %572 = vmatprep.subr.bf16.mxu0 0
    %573 = vmatpush1.bf16.msra.mxu0 0
    %574 = vmatprep.subr.bf16.mxu0 0
    %575 = vmatpush1.bf16.msra.mxu0 0
    %576 = vmatprep.mubr.bf16.mxu0 0
    %577 = vmatmul.mubr.bf16.gmra.mrb[0].mxu0 %v539
    %v578 = vpop.f32.mrb[0].mxu0
    %v579 = vadd.f32 0.0, %v578
    %v580 = vpop.f32.mrb[0].mxu0
    %v581 = vpop.f32.mrb[0].mxu0
    %v582 = vadd.f32 0.0, %v581
    %v583 = vpop.f32.mrb[0].mxu0
    %584 = vmatprep.mubr.bf16.mxu0 0
    %585 = vmatmul.mubr.bf16.gmra.mrb[0].mxu0 %v542
    %v586 = vpop.f32.mrb[0].mxu0
    %v587 = vadd.f32 0.0, %v586
    %v588 = vpop.f32.mrb[0].mxu0
    %v589 = vpop.f32.mrb[0].mxu0
    %v590 = vadd.f32 0.0, %v589
    %v591 = vpop.f32.mrb[0].mxu0
    %592 = vdwg.mxu0
    %v593 = vmax.f32 %v579, 0.0
    %v594 = vmax.f32 %v582, 0.0
    %v595 = vmax.f32 %v587, 0.0
    %v596 = vmax.f32 %v590, 0.0
    %v597 = vpack.c.bf16 %v594, %v593
    %v598 = vpack.c.bf16 %v596, %v595
    %599 = vmatprep.subr.bf16.mxu0 0
    %600 = vmatpush1.bf16.msra.mxu0 %v202
    %601 = vmatprep.subr.bf16.mxu0 0
    %602 = vmatpush1.bf16.msra.mxu0 %v203
    %603 = vmatprep.subr.bf16.mxu0 0
    %604 = vmatpush1.bf16.msra.mxu0 %v204
    %605 = vmatprep.subr.bf16.mxu0 0
    %606 = vmatpush1.bf16.msra.mxu0 %v205
    %607 = vmatprep.subr.bf16.mxu0 0
    %608 = vmatpush1.bf16.msra.mxu0 %v206
    %609 = vmatprep.subr.bf16.mxu0 0
    %610 = vmatpush1.bf16.msra.mxu0 %v207
    %611 = vmatprep.subr.bf16.mxu0 0
    %612 = vmatpush1.bf16.msra.mxu0 %v208
    %613 = vmatprep.subr.bf16.mxu0 0
    %614 = vmatpush1.bf16.msra.mxu0 %v209
    %615 = vmatprep.subr.bf16.mxu0 0
    %616 = vmatpush1.bf16.msra.mxu0 0
    %617 = vmatprep.subr.bf16.mxu0 0
    %618 = vmatpush1.bf16.msra.mxu0 0
    %619 = vmatprep.subr.bf16.mxu0 0
    %620 = vmatpush1.bf16.msra.mxu0 0
    %621 = vmatprep.subr.bf16.mxu0 0
    %622 = vmatpush1.bf16.msra.mxu0 0
    %623 = vmatprep.subr.bf16.mxu0 0
    %624 = vmatpush1.bf16.msra.mxu0 0
    %625 = vmatprep.subr.bf16.mxu0 0
    %626 = vmatpush1.bf16.msra.mxu0 0
    %627 = vmatprep.subr.bf16.mxu0 0
    %628 = vmatpush1.bf16.msra.mxu0 0
    %629 = vmatprep.subr.bf16.mxu0 0
    %630 = vmatpush1.bf16.msra.mxu0 0
    %631 = vmatprep.mubr.bf16.mxu0 0
    %632 = vmatmul.mubr.bf16.gmra.mrb[0].mxu0 %v597
    %v633 = vpop.f32.mrb[0].mxu0
    %v634 = vadd.f32 %v148, %v633
    %v635 = vpop.f32.mrb[0].mxu0
    %v636 = vpop.f32.mrb[0].mxu0
    %v637 = vadd.f32 %v149, %v636
    %v638 = vpop.f32.mrb[0].mxu0
    %639 = vmatprep.mubr.bf16.mxu0 0
    %640 = vmatmul.mubr.bf16.gmra.mrb[0].mxu0 %v598
    %v641 = vpop.f32.mrb[0].mxu0
    %v642 = vadd.f32 %v150, %v641
    %v643 = vpop.f32.mrb[0].mxu0
    %v644 = vpop.f32.mrb[0].mxu0
    %v645 = vadd.f32 %v151, %v644
    %v646 = vpop.f32.mrb[0].mxu0
    %647 = vdwg.mxu0
    %s648 = scalar_lea.vmem [#allocation2], 48
    %v649 = vld [vmem:[%s648] sm:$0xf]
    %v650 = vld [vmem:[%s648 + $0x4] sm:$0xf]
    %v651 = vld [vmem:[%s648 + $0x8] sm:$0xf]
    %v652 = vld [vmem:[%s648 + $0xc] sm:$0xf]
    %v653 = vpack.c.bf16 %v637, %v634
    %v654 = vpack.c.bf16 %v645, %v642
    %v659 = vunpack.c.l.b16 %v649
    %v660 = vunpack.c.l.b16 %v650
    %v661 = vunpack.c.l.b16 %v651
    %v662 = vunpack.c.l.b16 %v652
    %v663 = vpack.c.b16 %v660, %v659
    %v664 = vpack.c.b16 %v662, %v661
    %v666 = vsel %vm283, %v663, 0
    %v669 = vsel %vm283, %v664, 0
    %671 = vmatprep.subr.bf16.mxu0 0
    %672 = vmatpush1.bf16.msra.mxu0 %v653
    %673 = vmatprep.subr.bf16.mxu0 0
    %674 = vmatpush1.bf16.msra.mxu0 %v654
    %675 = vmatprep.subr.bf16.mxu0 0
    %676 = vmatpush1.bf16.msra.mxu0 0
    %677 = vmatprep.subr.bf16.mxu0 0
    %678 = vmatpush1.bf16.msra.mxu0 0
    %679 = vmatprep.subr.bf16.mxu0 0
    %680 = vmatpush1.bf16.msra.mxu0 0
    %681 = vmatprep.subr.bf16.mxu0 0
    %682 = vmatpush1.bf16.msra.mxu0 0
    %683 = vmatprep.subr.bf16.mxu0 0
    %684 = vmatpush1.bf16.msra.mxu0 0
    %685 = vmatprep.subr.bf16.mxu0 0
    %686 = vmatpush1.bf16.msra.mxu0 0
    %687 = vmatprep.subr.bf16.mxu0 0
    %688 = vmatpush1.bf16.msra.mxu0 0
    %689 = vmatprep.subr.bf16.mxu0 0
    %690 = vmatpush1.bf16.msra.mxu0 0
    %691 = vmatprep.subr.bf16.mxu0 0
    %692 = vmatpush1.bf16.msra.mxu0 0
    %693 = vmatprep.subr.bf16.mxu0 0
    %694 = vmatpush1.bf16.msra.mxu0 0
    %695 = vmatprep.subr.bf16.mxu0 0
    %696 = vmatpush1.bf16.msra.mxu0 0
    %697 = vmatprep.subr.bf16.mxu0 0
    %698 = vmatpush1.bf16.msra.mxu0 0
    %699 = vmatprep.subr.bf16.mxu0 0
    %700 = vmatpush1.bf16.msra.mxu0 0
    %701 = vmatprep.subr.bf16.mxu0 0
    %702 = vmatpush1.bf16.msra.mxu0 0
    %703 = vmatprep.mubr.bf16.mxu0 0
    %704 = vmatmul.mubr.bf16.gmra.mrb[0].mxu0 %v666
    %v705 = vpop.f32.mrb[0].mxu0
    %v706 = vadd.f32 0.0, %v705
    %v707 = vpop.f32.mrb[0].mxu0
    %v708 = vpop.f32.mrb[0].mxu0
    %v709 = vadd.f32 0.0, %v708
    %v710 = vpop.f32.mrb[0].mxu0
    %711 = vmatprep.mubr.bf16.mxu0 0
    %712 = vmatmul.mubr.bf16.gmra.mrb[0].mxu0 %v669
    %v713 = vpop.f32.mrb[0].mxu0
    %v714 = vadd.f32 0.0, %v713
    %v715 = vpop.f32.mrb[0].mxu0
    %v716 = vpop.f32.mrb[0].mxu0
    %v717 = vadd.f32 0.0, %v716
    %v718 = vpop.f32.mrb[0].mxu0
    %719 = vdwg.mxu0
    %v720 = vmax.f32 %v706, 0.0
    %v721 = vmax.f32 %v709, 0.0
    %v722 = vmax.f32 %v714, 0.0
    %v723 = vmax.f32 %v717, 0.0
    %v724 = vld [vmem:[%s5] sm:$0xf]
    %v725 = vpack.c.bf16 %v721, %v720
    %v726 = vpack.c.bf16 %v723, %v722
    %v727 = vld [vmem:[%s6] sm:$0xff]
    %729 = vset.pattern.permute.xlu0 0
    %730 = vperm.xlu0 %729, %v727
    %v731 = vpop.permute.xlu0 %730
    %v734 = vsel %vm283, %v724, 0
    %736 = vmatprep.subr.bf16.mxu0 0
    %737 = vmatpush1.bf16.msra.mxu0 %v725
    %738 = vmatprep.subr.bf16.mxu0 0
    %739 = vmatpush1.bf16.msra.mxu0 %v726
    %740 = vmatprep.subr.bf16.mxu0 0
    %741 = vmatpush1.bf16.msra.mxu0 0
    %742 = vmatprep.subr.bf16.mxu0 0
    %743 = vmatpush1.bf16.msra.mxu0 0
    %744 = vmatprep.subr.bf16.mxu0 0
    %745 = vmatpush1.bf16.msra.mxu0 0
    %746 = vmatprep.subr.bf16.mxu0 0
    %747 = vmatpush1.bf16.msra.mxu0 0
    %748 = vmatprep.subr.bf16.mxu0 0
    %749 = vmatpush1.bf16.msra.mxu0 0
    %750 = vmatprep.subr.bf16.mxu0 0
    %751 = vmatpush1.bf16.msra.mxu0 0
    %752 = vmatprep.subr.bf16.mxu0 0
    %753 = vmatpush1.bf16.msra.mxu0 0
    %754 = vmatprep.subr.bf16.mxu0 0
    %755 = vmatpush1.bf16.msra.mxu0 0
    %756 = vmatprep.subr.bf16.mxu0 0
    %757 = vmatpush1.bf16.msra.mxu0 0
    %758 = vmatprep.subr.bf16.mxu0 0
    %759 = vmatpush1.bf16.msra.mxu0 0
    %760 = vmatprep.subr.bf16.mxu0 0
    %761 = vmatpush1.bf16.msra.mxu0 0
    %762 = vmatprep.subr.bf16.mxu0 0
    %763 = vmatpush1.bf16.msra.mxu0 0
    %764 = vmatprep.subr.bf16.mxu0 0
    %765 = vmatpush1.bf16.msra.mxu0 0
    %766 = vmatprep.subr.bf16.mxu0 0
    %767 = vmatpush1.bf16.msra.mxu0 0
    %768 = vmatprep.mubr.bf16.mxu0 0
    %769 = vmatmul.mubr.bf16.gmra.mrb[0].mxu0 %v734
    %v770 = vpop.f32.mrb[0].mxu0
    %v771 = vadd.f32 %v731, %v770
    %v772 = vpop.f32.mrb[0].mxu0
    %v773 = vpop.f32.mrb[0].mxu0
    %v774 = vpop.f32.mrb[0].mxu0
    %775 = vdwg.mxu0
    %v776 = vrot.slane %v771, 4
    %v777 = vmax.f32 %v771, %v776
    %v778 = vrot.slane %v777, 2
    %v779 = vmax.f32 %v777, %v778
    %v780 = vrot.slane %v779, 1
    %v781 = vmax.f32 %v779, %v780
    %v782 = vsub.f32 %v771, %v781
    %v783 = vmul.f32 %v782, 1.442695
    %v784 = vpow.pop %v783
    %v785 = vrot.slane %v784, 4
    %v786 = vadd.f32 %v784, %v785
    %v787 = vrot.slane %v786, 2
    %v788 = vadd.f32 %v786, %v787
    %v789 = vrot.slane %v788, 1
    %v790 = vadd.f32 %v788, %v789
    %v791 = vlog2.pop %v790
    %v792 = vmul.f32 %v791, 0.6931472
    %v793 = vsub.f32 %v782, %v792
    %794 = vst [vmem:[#allocation5] sm:$0xff] %v793
    // Predicated region
    $region34: #{tpu_custom_call.1} parent=1 // pred_check
      _
    $region35: #{tpu_custom_call.1} parent=1 // pred_check_branch
      %796 = sbr.rel (0) target = $region37
    $region36: #{tpu_custom_call.1} parent=1 // pred_region
      %s798 = ssub.s32 128, 128
      %799 = vsyncadd [#allocation4], %s798
      %s801 = sshll.u32 [#allocation5], 4
      %s802 = int_to_ptr.vmem [resolvable:$true] %s801
      %804 = dma.vmem_to_hbm [thread:$0]  %s802, 128, %s7, [#allocation4]
    $region37: #{tpu_custom_call.1} parent=1 // pred_fallthru
      _
    // Predicated region
    $region38: #{tpu_custom_call.1} parent=1 // pred_check
      _
    $region39: #{tpu_custom_call.1} parent=1 // pred_check_branch
      %806 = sbr.rel (0) target = $region41
    $region40: #{tpu_custom_call.1} parent=1 // pred_region
      %807 = dma.done [#allocation4], 128
    $region41: #{tpu_custom_call.1} parent=1 // pred_fallthru
      _
    %808 = vsyncpa [#allocation3], 1
    %809 = vsyncpa [#allocation4], 1

</llo_original>
